<compile_context>
chip_gen: v5e
topology: v5e:2x2
jax: 0.10.0
libtpu: 0.0.40
codegen_flags: <defaults>
</compile_context>

<pallas_src>
import math
import functools

import jax
import jax.numpy as jnp
from jax import lax
from jax.experimental import pallas as pl
from jax.experimental.pallas import tpu as pltpu


# --------------------------------------------------------------------------
# Helpers
# --------------------------------------------------------------------------
def _round_up(n, m):
    return ((n + m - 1) // m) * m


def _largest_divisor_leq(n, cap):
    for d in range(min(n, cap), 0, -1):
        if n % d == 0:
            return d
    return 1


def _pad_gate_cols(w, H, H_pad):
    """Pad each of the 4 concatenated gate blocks (i|f|g|o) along last dim H -> H_pad."""
    if H_pad == H:
        return w
    lead = w.shape[:-1]
    w4 = w.reshape(*lead, 4, H)
    pad = [(0, 0)] * (w4.ndim - 1) + [(0, H_pad - H)]
    return jnp.pad(w4, pad).reshape(*lead, 4 * H_pad)


@functools.lru_cache(maxsize=1)
def _vmem_budget_bytes():
    """Per-generation VMEM budget used both for tile sizing and vmem_limit_bytes."""
    kind = ""
    try:
        kind = jax.devices()[0].device_kind.lower()
    except Exception:
        pass
    phys = 64 * 1024 * 1024 if "v7" in kind else 128 * 1024 * 1024
    return min(int(phys * 0.75), 100 * 1024 * 1024)   # ~48 MiB v7x, ~96 MiB v5e/v6e


def _balanced_tile(dim, align, cap):
    """Pick (tile, padded_dim): tile multiple of `align`, tile ~<= cap, minimal padding."""
    d = _round_up(max(dim, 1), align)
    cap = max(align, (cap // align) * align)
    num = -(-d // cap)
    tile = _round_up(-(-d // num), align)
    return tile, tile * num


_HAS_BUFFERED = hasattr(pl, "Buffered")


def _resident_spec(shape, index_map):
    """BlockSpec for a constant-index (grid-resident) input: single-buffered when possible."""
    if _HAS_BUFFERED:
        try:
            return pl.BlockSpec(shape, index_map, pipeline_mode=pl.Buffered(1))
        except TypeError:
            pass
    return pl.BlockSpec(shape, index_map)


# --------------------------------------------------------------------------
# Pallas kernel: tiled   out = x @ w + b   (bf16 MXU, f32 accumulate, K-tiled).
# Grid = (vocab j [outer], rows i, K k [inner/"arbitrary"]).  With j outermost and a
# single row tile, the (K x V) weight is streamed from HBM exactly once.
# --------------------------------------------------------------------------
def _matmul_bias_kernel(x_ref, w_ref, b_ref, o_ref, acc_ref):
    @pl.when(pl.program_id(2) == 0)
    def _():
        acc_ref[...] = jnp.zeros_like(acc_ref)

    acc_ref[...] += jnp.dot(x_ref[...], w_ref[...],
                            preferred_element_type=jnp.float32)

    @pl.when(pl.program_id(2) == pl.num_programs(2) - 1)
    def _():
        o_ref[...] = (acc_ref[...] + b_ref[...]).astype(o_ref.dtype)


def matmul_bias(x, w_bf16, b, *, out_dtype=jnp.float32, stream_w_once=False):
    """x: (N, K) float; w_bf16: (K, V) bf16; b: (1, V) f32 -> (N, V) out_dtype."""
    N, K = x.shape
    V = w_bf16.shape[-1]
    budget = _vmem_budget_bytes()

    tk, K_pad = _balanced_tile(K, 128, 2048)
    tv, V_pad = _balanced_tile(V, 128, 512)

    out_bytes = jnp.dtype(out_dtype).itemsize
    fixed = 2 * tk * tv * 2 + 2 * tv * 4                   # w tile (2 bufs) + bias tile
    per_row = 2 * tk * 2 + 2 * tv * out_bytes + tv * 4     # x (bf16, 2 bufs) + out (2 bufs) + acc
    avail = max(int(budget * 0.75) - fixed, 8 * per_row)
    tn_cap = max(8, (avail // per_row) // 8 * 8)
    if not stream_w_once:
        tn_cap = min(tn_cap, 512)
    tn, N_pad = _balanced_tile(N, 8, tn_cap)

    x_p = jnp.pad(x.astype(jnp.bfloat16), ((0, N_pad - N), (0, K_pad - K)))
    w_p = jnp.pad(w_bf16, ((0, K_pad - K), (0, V_pad - V)))
    b_p = jnp.pad(b, ((0, 0), (0, V_pad - V)))

    out = pl.pallas_call(
        _matmul_bias_kernel,
        out_shape=jax.ShapeDtypeStruct((N_pad, V_pad), out_dtype),
        grid_spec=pltpu.PrefetchScalarGridSpec(
            num_scalar_prefetch=0,
            grid=(V_pad // tv, N_pad // tn, K_pad // tk),
            in_specs=[pl.BlockSpec((tn, tk), lambda j, i, k: (i, k)),
                      pl.BlockSpec((tk, tv), lambda j, i, k: (k, j)),
                      pl.BlockSpec((1, tv), lambda j, i, k: (0, j))],
            out_specs=pl.BlockSpec((tn, tv), lambda j, i, k: (i, j)),
            scratch_shapes=[pltpu.VMEM((tn, tv), jnp.float32)]),
        compiler_params=pltpu.CompilerParams(
            dimension_semantics=("parallel", "parallel", "arbitrary"),
            vmem_limit_bytes=budget),
    )(x_p, w_p, b_p)
    return out[:N, :V]


# --------------------------------------------------------------------------
# Pallas kernel: LSTM recurrence (gates = x_proj[t] + h @ W_hh).
# Grid over chunks of timesteps; time loop runs in-kernel, h/c carried in VMEM scratch.
# --------------------------------------------------------------------------
def _make_lstm_kernel(T_total, chunk, unroll, needs_mask):
    def kernel(xp_ref, whh_ref, h0_ref, c0_ref, y_ref, hN_ref, cN_ref, h_sc, c_sc):
        chunk_id = pl.program_id(0)

        @pl.when(chunk_id == 0)
        def _():
            h_sc[...] = h0_ref[...]
            c_sc[...] = c0_ref[...]

        nh = h_sc.shape[-1]                       # H_pad (multiple of 128: lane-aligned gates)
        valid = T_total - chunk_id * chunk        # >= chunk for all but a ragged last chunk

        def step(t, carry):
            h, c = carry
            gates = (xp_ref[t].astype(jnp.float32)        # bias folded in at projection time
                     + jnp.dot(h.astype(jnp.bfloat16), whh_ref[...],
                               preferred_element_type=jnp.float32))
            i_g = jax.nn.sigmoid(gates[:, 0 * nh:1 * nh])
            f_g = jax.nn.sigmoid(gates[:, 1 * nh:2 * nh])
            g_g = jnp.tanh(gates[:, 2 * nh:3 * nh])
            o_g = jax.nn.sigmoid(gates[:, 3 * nh:4 * nh])
            c_new = f_g * c + i_g * g_g
            h_new = o_g * jnp.tanh(c_new)
            y_ref[t] = h_new.astype(y_ref.dtype)          # padded rows trimmed on the host
            if needs_mask:
                keep = (t < valid).astype(jnp.float32)    # mask ragged-tail steps out of the carry
                h_new = keep * h_new + (1.0 - keep) * h
                c_new = keep * c_new + (1.0 - keep) * c
            return h_new, c_new

        h_fin, c_fin = lax.fori_loop(0, chunk, step, (h_sc[...], c_sc[...]),
                                     unroll=unroll)
        h_sc[...] = h_fin
        c_sc[...] = c_fin
        # Constant output block index on a sequential ("arbitrary") axis: the output stays
        # resident and the LAST write (final chunk) is what lands in HBM.  Do not reorder
        # the grid without revisiting this.
        hN_ref[...] = h_fin
        cN_ref[...] = c_fin

    return kernel


def _pick_chunk(T, B_pad, H_pad, budget, chunk_cap):
    """Largest T-chunk whose VMEM footprint fits the budget; prefer exact divisors of T."""
    fixed = (H_pad * 4 * H_pad * 2            # W_hh bf16, Buffered(1)
             + 2 * B_pad * H_pad * 4          # h0, c0 (Buffered(1), f32)
             + 2 * 2 * B_pad * H_pad * 4      # hN, cN outputs (double-buffered, f32)
             + 2 * B_pad * H_pad * 4)         # h/c VMEM scratch
    per_step = (2 * B_pad * 4 * H_pad * 2     # x_proj block (bf16, 2 buffers)
                + 2 * B_pad * H_pad * 2)      # y block (bf16, 2 buffers)
    avail = int(budget * 0.8) - fixed
    cap = max(1, min(chunk_cap, avail // per_step, T))
    div = _largest_divisor_leq(T, cap)        # exact divisor -> no T padding needed
    return div if div * 2 >= cap else cap


def lstm_layer(x_pad, layer, H_pad, *, chunk_cap=64):
    """One LSTM layer on batch-padded inputs.

    x_pad: (T, B_pad, K) bf16 (K matches layer['w_ih'] rows).
    Returns y (T, B_pad, H_pad) bf16, h_n (B_pad, H_pad) f32, c_n (B_pad, H_pad) f32.
    """
    T, B_pad, K = x_pad.shape
    budget = _vmem_budget_bytes()

    # Hoisted input projection: one big MXU matmul over all T*B_pad rows, bf16 output.
    x_proj = matmul_bias(x_pad.reshape(T * B_pad, K), layer["w_ih"], layer["b"],
                         out_dtype=jnp.bfloat16)
    x_proj = x_proj.reshape(T, B_pad, 4 * H_pad)

    chunk = _pick_chunk(T, B_pad, H_pad, budget, chunk_cap)
    T_pad = _round_up(T, chunk)
    if T_pad != T:
        x_proj = jnp.pad(x_proj, ((0, T_pad - T), (0, 0), (0, 0)))

    unroll = bool(4 * H_pad <= 1024)          # don't explode program size at realistic nhid
    kernel = _make_lstm_kernel(T, chunk, unroll, needs_mask=(T_pad != T))

    # TODO(synk): on v7x, split the 4*H_pad gate columns across the two TensorCores
    #             (core_map + VMEM_SHARED h exchange) so the second core is not idle.
    y_p, hN, cN = pl.pallas_call(
        kernel,
        out_shape=(jax.ShapeDtypeStruct((T_pad, B_pad, H_pad), jnp.bfloat16),
                   jax.ShapeDtypeStruct((B_pad, H_pad), jnp.float32),
                   jax.ShapeDtypeStruct((B_pad, H_pad), jnp.float32)),
        grid_spec=pltpu.PrefetchScalarGridSpec(
            num_scalar_prefetch=0,
            grid=(T_pad // chunk,),
            in_specs=[pl.BlockSpec((chunk, B_pad, 4 * H_pad), lambda i: (i, 0, 0)),
                      _resident_spec((H_pad, 4 * H_pad), lambda i: (0, 0)),   # W_hh: 1 buffer
                      _resident_spec((B_pad, H_pad), lambda i: (0, 0)),       # h0:   1 buffer
                      _resident_spec((B_pad, H_pad), lambda i: (0, 0))],      # c0:   1 buffer
            out_specs=(pl.BlockSpec((chunk, B_pad, H_pad), lambda i: (i, 0, 0)),
                       pl.BlockSpec((B_pad, H_pad), lambda i: (0, 0)),
                       pl.BlockSpec((B_pad, H_pad), lambda i: (0, 0))),
            scratch_shapes=[pltpu.VMEM((B_pad, H_pad), jnp.float32),
                            pltpu.VMEM((B_pad, H_pad), jnp.float32)]),
        compiler_params=pltpu.CompilerParams(
            dimension_semantics=("arbitrary",),
            vmem_limit_bytes=budget),
    )(x_proj, layer["w_hh"], layer["h0"], layer["c0"])

    if T_pad != T:
        y_p = y_p[:T]
    return y_p, hN, cN


# --------------------------------------------------------------------------
# One-time parameter preparation (hoisted out of the forward).
# --------------------------------------------------------------------------
def prepare_params(params):
    layers_raw = params["lstm"]
    H = layers_raw[0]["h0"].shape[-1]
    B = layers_raw[0]["h0"].shape[0]
    H_pad = _round_up(H, 128)                 # lane-aligned gate blocks
    B_pad = _round_up(B, 16)                  # bf16 LHS sublane alignment (16, not 8)

    prep = {"H": H, "H_pad": H_pad, "B": B, "B_pad": B_pad}
    prep["embedding_bf16"] = params["embedding"].astype(jnp.bfloat16)

    layers = []
    for li, layer in enumerate(layers_raw):
        w_ih_p = _pad_gate_cols(layer["w_ih"], H, H_pad)
        if li > 0:
            # Pad input rows H -> H_pad so the previous layer's padded output feeds directly
            # (padded columns of that output are exactly zero).
            w_ih_p = jnp.pad(w_ih_p, ((0, H_pad - H), (0, 0)))
        w_hh_p = jnp.pad(_pad_gate_cols(layer["w_hh"], H, H_pad),
                         ((0, H_pad - H), (0, 0)))
        layers.append({
            "w_ih": w_ih_p.astype(jnp.bfloat16),                  # (in_dim[_pad], 4H_pad)
            "w_hh": w_hh_p.astype(jnp.bfloat16),                  # (H_pad, 4H_pad)
            "b": _pad_gate_cols(layer["b"], H, H_pad),             # (1, 4H_pad) f32
            "h0": jnp.pad(layer["h0"], ((0, B_pad - B), (0, H_pad - H))),
            "c0": jnp.pad(layer["c0"], ((0, B_pad - B), (0, H_pad - H))),
        })
    prep["lstm"] = layers
    prep["dec_w_t"] = params["dec_w_t"].astype(jnp.bfloat16)       # (nhid, ntoken)
    prep["dec_b"] = params["dec_b"]                                # (1, ntoken) f32
    return jax.tree_util.tree_map(jnp.asarray, prep)


# --------------------------------------------------------------------------
# Full model forward (glue in plain JAX, hot paths in Pallas kernels).
# --------------------------------------------------------------------------
def rnn_model_forward(tokens, prep, *, chunk_cap=64):
    """tokens: (seq, batch) int32 -> (decoded (seq, batch, ntoken), (h_n, c_n))."""
    T, B = tokens.shape
    B_pad, H, H_pad = prep["B_pad"], prep["H"], prep["H_pad"]

    # Embedding lookup (gather) in plain JAX, emitted bf16.
    # TODO(synk): fuse the gather into the first-layer projection via scalar-prefetched
    #             token ids + pl.Element row gather.
    emb = jnp.take(prep["embedding_bf16"], tokens, axis=0)          # (T, B, ninp) bf16
    # Dropout = identity in eval mode.
    # TODO(synk): stochastic dropout (p=0.5) for training mode not implemented.

    # Pad the batch ONCE before the hoisted projection; the padded layout flows through
    # every layer (padded rows/cols never contaminate valid ones).
    x = jnp.pad(emb, ((0, 0), (0, B_pad - B), (0, 0)))

    h_list, c_list = [], []
    for layer in prep["lstm"]:
        x, h_n_p, c_n_p = lstm_layer(x, layer, H_pad, chunk_cap=chunk_cap)
        h_list.append(h_n_p[:B, :H])
        c_list.append(c_n_p[:B, :H])

    y = x[:, :B, :H]                                                 # (T, B, H) bf16
    decoded = matmul_bias(y.reshape(T * B, H), prep["dec_w_t"], prep["dec_b"],
                          out_dtype=jnp.float32, stream_w_once=True)
    decoded = decoded.reshape(T, B, -1)

    hidden = (jnp.stack(h_list, axis=0), jnp.stack(c_list, axis=0))
    return decoded, hidden


# --------------------------------------------------------------------------
# Pure-JAX f32 reference (for correctness check at toy sizes).
# --------------------------------------------------------------------------
def reference_forward(tokens, params):
    x = jnp.take(params["embedding"], tokens, axis=0)
    h_list, c_list = [], []
    for layer in params["lstm"]:
        H = layer["h0"].shape[-1]
        w_ih, w_hh, b = layer["w_ih"], layer["w_hh"], layer["b"]

        def step(carry, x_t, w_ih=w_ih, w_hh=w_hh, b=b, H=H):
            h, c = carry
            g = x_t @ w_ih + h @ w_hh + b
            i = jax.nn.sigmoid(g[:, :H])
            f = jax.nn.sigmoid(g[:, H:2 * H])
            gg = jnp.tanh(g[:, 2 * H:3 * H])
            o = jax.nn.sigmoid(g[:, 3 * H:])
            c = f * c + i * gg
            h = o * jnp.tanh(c)
            return (h, c), h

        (h_n, c_n), y = lax.scan(step, (layer["h0"], layer["c0"]), x)
        x = y
        h_list.append(h_n)
        c_list.append(c_n)
    T, B, H = x.shape
    dec = x.reshape(T * B, H) @ params["dec_w_t"] + params["dec_b"]
    return dec.reshape(T, B, -1), (jnp.stack(h_list), jnp.stack(c_list))


# --------------------------------------------------------------------------
# Deterministic parameter init (PyTorch-like scales).
# --------------------------------------------------------------------------
def init_params(key, ntoken, ninp, nhid, nlayers, batch):
    keys = jax.random.split(key, 4 + 4 * nlayers)
    params = {}
    params["embedding"] = jax.random.normal(keys[0], (ntoken, ninp), jnp.float32)

    bound = 1.0 / math.sqrt(nhid)
    dec_w = jax.random.uniform(keys[1], (ntoken, nhid), jnp.float32, -bound, bound)
    params["dec_w_t"] = dec_w.T                               # (nhid, ntoken)
    params["dec_b"] = jnp.zeros((1, ntoken), jnp.float32)

    layers = []
    for l in range(nlayers):
        k_ih, k_hh, k_bih, k_bhh = keys[2 + 4 * l: 6 + 4 * l]
        in_dim = ninp if l == 0 else nhid
        w_ih = jax.random.uniform(k_ih, (in_dim, 4 * nhid), jnp.float32, -bound, bound)
        w_hh = jax.random.uniform(k_hh, (nhid, 4 * nhid), jnp.float32, -bound, bound)
        b_ih = jax.random.uniform(k_bih, (4 * nhid,), jnp.float32, -bound, bound)
        b_hh = jax.random.uniform(k_bhh, (4 * nhid,), jnp.float32, -bound, bound)
        layers.append({
            "w_ih": w_ih,
            "w_hh": w_hh,
            "b": (b_ih + b_hh).reshape(1, 4 * nhid),
            "h0": jnp.zeros((batch, nhid), jnp.float32),
            "c0": jnp.zeros((batch, nhid), jnp.float32),
        })
    params["lstm"] = layers
    return params


if __name__ == "__main__":
    def run_case(seq, batch, ntoken, ninp, nhid, nlayers, chunk_cap):
        key = jax.random.PRNGKey(0)
        k_tok, k_par = jax.random.split(key)
        tokens = jax.random.randint(k_tok, (seq, batch), 0, ntoken, dtype=jnp.int32)
        params = init_params(k_par, ntoken, ninp, nhid, nlayers, batch)
        prep = prepare_params(params)

        decoded, (h_n, c_n) = rnn_model_forward(tokens, prep, chunk_cap=chunk_cap)
        jax.block_until_ready((decoded, h_n, c_n))

        assert decoded.shape == (seq, batch, ntoken)
        assert h_n.shape == (nlayers, batch, nhid)
        assert c_n.shape == (nlayers, batch, nhid)

        # Relative-error check vs. pure-JAX f32 reference (bf16 matmuls/streams).
        dec_ref, (h_ref, c_ref) = reference_forward(tokens, params)

        def check(a, b):
            err = float(jnp.max(jnp.abs(a.astype(jnp.float32) - b)))
            scale = float(jnp.max(jnp.abs(b)))
            assert err < 0.05 * scale + 0.02, (err, scale)

        check(decoded, dec_ref)
        check(h_n, h_ref)
        check(c_n, c_ref)

    # Smooth shapes (divisor-friendly T, aligned-ish dims).
    run_case(seq=8, batch=2, ntoken=64, ninp=32, nhid=32, nlayers=2, chunk_cap=64)
    # Awkward shapes: prime T with chunk_cap=3 (ragged masked tail), batch not a multiple
    # of 8/16, hidden not a multiple of 128, odd vocab — exercises all padding paths.
    run_case(seq=7, batch=3, ntoken=67, ninp=24, nhid=48, nlayers=2, chunk_cap=3)

    print("KERNEL_OK")
</pallas_src>

<mosaic_0001>
module attributes {stable_mosaic.version = 11 : i64} {
  func.func @_matmul_bias_kernel(%arg0: i32, %arg1: i32, %arg2: i32, %arg3: memref<128x128xbf16, #tpu.memory_space<vmem>>, %arg4: memref<128x512xbf16, #tpu.memory_space<vmem>>, %arg5: memref<1x512xf32, #tpu.memory_space<vmem>>, %arg6: memref<128x512xbf16, #tpu.memory_space<vmem>>, %arg7: memref<128x512xf32, #tpu.memory_space<vmem>>) attributes {dimension_semantics = [#tpu.dimension_semantics<parallel>, #tpu.dimension_semantics<parallel>, #tpu.dimension_semantics<arbitrary>], iteration_bounds = array<i64: 1, 1, 1>, scalar_prefetch = 0 : i64, scratch_operands = 1 : i64, tpu.core_type = #tpu.core_type<tc>, window_params = [{transform_indices = @transform_0, window_bounds = array<i64: 128, 128>}, {transform_indices = @transform_1, window_bounds = array<i64: 128, 512>}, {transform_indices = @transform_2, window_bounds = array<i64: 1, 512>}, {transform_indices = @transform_3, window_bounds = array<i64: 128, 512>}]} {
    %c0_i32 = arith.constant 0 : i32
    %0 = arith.cmpi eq, %arg2, %c0_i32 : i32
    %1 = arith.extui %0 : i1 to i32
    %c0_i32_0 = arith.constant 0 : i32
    %2 = arith.cmpi ne, %1, %c0_i32_0 : i32
    scf.if %2 {
      %cst_10 = arith.constant 0.000000e+00 : f32
      %12 = vector.broadcast %cst_10 : f32 to vector<128x512xf32>
      %c0_11 = arith.constant 0 : index
      %c0_12 = arith.constant 0 : index
      %13 = vector.load %arg7[%c0_11, %c0_12] : memref<128x512xf32, #tpu.memory_space<vmem>>, vector<128x512xf32>
      tpu.vector_store %arg7[%c0_11, %c0_12], %12 {strides = array<i32>} : memref<128x512xf32, #tpu.memory_space<vmem>>, vector<128x512xf32>,
    } else {
    }
    %c0 = arith.constant 0 : index
    %c0_1 = arith.constant 0 : index
    %3 = vector.load %arg7[%c0, %c0_1] : memref<128x512xf32, #tpu.memory_space<vmem>>, vector<128x512xf32>
    %c0_2 = arith.constant 0 : index
    %c0_3 = arith.constant 0 : index
    %4 = vector.load %arg3[%c0_2, %c0_3] : memref<128x128xbf16, #tpu.memory_space<vmem>>, vector<128x128xbf16>
    %c0_4 = arith.constant 0 : index
    %c0_5 = arith.constant 0 : index
    %5 = vector.load %arg4[%c0_4, %c0_5] : memref<128x512xbf16, #tpu.memory_space<vmem>>, vector<128x512xbf16>
    %cst = arith.constant dense<0.000000e+00> : vector<128x512xf32>
    %6 = tpu.matmul %4, %5, %cst {dimension_numbers = #tpu.dot_dimension_numbers<[1], [0], [0], [1], [0, 0, 1, 1], [], []>} : vector<128x128xbf16>, vector<128x512xbf16>, vector<128x512xf32> -> vector<128x512xf32>
    %7 = arith.addf %3, %6 : vector<128x512xf32>
    %c0_6 = arith.constant 0 : index
    %c0_7 = arith.constant 0 : index
    %8 = vector.load %arg7[%c0_6, %c0_7] : memref<128x512xf32, #tpu.memory_space<vmem>>, vector<128x512xf32>
    tpu.vector_store %arg7[%c0_6, %c0_7], %7 {strides = array<i32>} : memref<128x512xf32, #tpu.memory_space<vmem>>, vector<128x512xf32>,
    %c0_i32_8 = arith.constant 0 : i32
    %9 = arith.cmpi eq, %arg2, %c0_i32_8 : i32
    %10 = arith.extui %9 : i1 to i32
    %c0_i32_9 = arith.constant 0 : i32
    %11 = arith.cmpi ne, %10, %c0_i32_9 : i32
    scf.if %11 {
      %c0_10 = arith.constant 0 : index
      %c0_11 = arith.constant 0 : index
      %12 = vector.load %arg7[%c0_10, %c0_11] : memref<128x512xf32, #tpu.memory_space<vmem>>, vector<128x512xf32>
      %c0_12 = arith.constant 0 : index
      %c0_13 = arith.constant 0 : index
      %13 = vector.load %arg5[%c0_12, %c0_13] : memref<1x512xf32, #tpu.memory_space<vmem>>, vector<1x512xf32>
      %14 = vector.broadcast %13 : vector<1x512xf32> to vector<128x512xf32>
      %15 = arith.addf %12, %14 : vector<128x512xf32>
      %16 = arith.truncf %15 : vector<128x512xf32> to vector<128x512xbf16>
      %c0_14 = arith.constant 0 : index
      %c0_15 = arith.constant 0 : index
      %17 = vector.load %arg6[%c0_14, %c0_15] : memref<128x512xbf16, #tpu.memory_space<vmem>>, vector<128x512xbf16>
      tpu.vector_store %arg6[%c0_14, %c0_15], %16 {strides = array<i32>} : memref<128x512xbf16, #tpu.memory_space<vmem>>, vector<128x512xbf16>,
    } else {
    }
    return
  }
  func.func @transform_0(%arg0: i32, %arg1: i32, %arg2: i32) -> (i32, i32) {
    %c0_i32 = arith.constant 0 : i32
    return %arg1, %arg2 : i32, i32
  }
  func.func @transform_1(%arg0: i32, %arg1: i32, %arg2: i32) -> (i32, i32) {
    %c0_i32 = arith.constant 0 : i32
    return %arg2, %arg0 : i32, i32
  }
  func.func @transform_2(%arg0: i32, %arg1: i32, %arg2: i32) -> (i32, i32) {
    %c0_i32 = arith.constant 0 : i32
    %c0_i32_0 = arith.constant 0 : i32
    return %c0_i32, %arg0 : i32, i32
  }
  func.func @transform_3(%arg0: i32, %arg1: i32, %arg2: i32) -> (i32, i32) {
    %c0_i32 = arith.constant 0 : i32
    return %arg1, %arg0 : i32, i32
  }
}

</mosaic_0001>

<llo_original>
// kernel: tpu_custom_call.1
$region0: #{tpu_custom_call.1}
  #allocation0 [shape = 'u32[]', space=smem, size = 0x4, offset = 0x4, fixed_abs, tag = 'smem constant byte address 0x4 - core index']
  #allocation1 [shape = 'u32[72,128]{1,0:T(1,128)}', space=vmem, size = 0x9000, scoped, tag = 'internal scratch']
  #allocation2 [shape = 'f32[128,512]{1,0:T(8,128)}', space=vmem, size = 0x40000, scoped, tag = 'scratch operand']
  %s0 = inlined_call_operand.hbm [shape: bf16[128,128], index: 0, kind: input, shape index: {}]
  %s1 = inlined_call_operand.hbm [shape: bf16[128,512], index: 1, kind: input, shape index: {}]
  %s2 = inlined_call_operand.hbm [shape: f32[1,512], index: 2, kind: input, shape index: {}]
  %s3 = inlined_call_operand.hbm [shape: bf16[128,512], index: 3, kind: output, shape index: {}]
  %s4 = sld [smem:[#allocation0]]
  $region42: #{tpu_custom_call.1} parent=0
    _
  %s6 = ssub.s32 1, %s4
  %s7 = scalar_select 0, %s6, %s4
  $region1: #{tpu_custom_call.1} parent=0
    #allocation3 [shape = 'u8[32768]{0}', space=vmem, size = 0x8000, scoped, tag = 'input window, operand 0, single buffered']
    #allocation4 [shape = 's32[1]{0}', space=sflag, size = 0x4, scoped, tag = 'scoped memory for tpu_custom_call.1']
    #allocation5 [shape = 's32[1]{0}', space=sflag, size = 0x4, scoped, tag = 'scoped memory for tpu_custom_call.1']
    #allocation6 [shape = 'u8[131072]{0}', space=vmem, size = 0x20000, scoped, tag = 'input window, operand 1, single buffered']
    #allocation7 [shape = 's32[1]{0}', space=sflag, size = 0x4, scoped, tag = 'scoped memory for tpu_custom_call.1']
    #allocation8 [shape = 'u8[2048]{0}', space=vmem, size = 0x800, scoped, tag = 'input window, operand 2, single buffered']
    #allocation9 [shape = 'u8[131072]{0}', space=vmem, size = 0x20000, scoped, tag = 'output window, operand 0, single buffered']
    %8 = vsyncpa [#allocation4], 0
    %9 = vsyncpa [#allocation7], 0
    %10 = vsyncpa [#allocation5], 0
    // Predicated region
    $region2: #{tpu_custom_call.1} parent=1 // pred_check
      _
    $region3: #{tpu_custom_call.1} parent=1 // pred_check_branch
      %12 = sbr.rel (0) target = $region5
    $region4: #{tpu_custom_call.1} parent=1 // pred_region
      %14 = vsyncadd [#allocation4], 0
      %s15 = sshll.u32 %s0, 4
      %s16 = int_to_ptr.hbm [resolvable:$true] %s15
      %s17 = sshll.u32 [#allocation3], 4
      %s18 = int_to_ptr.vmem [resolvable:$true] %s17
      %23 = dma.hbm_to_vmem [thread:$0]  %s16, 1024, %s18, [#allocation4], 64, 64, 4
    $region5: #{tpu_custom_call.1} parent=1 // pred_fallthru
      _
    // Predicated region
    $region6: #{tpu_custom_call.1} parent=1 // pred_check
      _
    $region7: #{tpu_custom_call.1} parent=1 // pred_check_branch
      %25 = sbr.rel (0) target = $region9
    $region8: #{tpu_custom_call.1} parent=1 // pred_region
      %27 = vsyncadd [#allocation7], 0
      %s28 = sshll.u32 %s1, 4
      %s29 = int_to_ptr.hbm [resolvable:$true] %s28
      %s30 = sshll.u32 [#allocation6], 4
      %s31 = int_to_ptr.vmem [resolvable:$true] %s30
      %36 = dma.hbm_to_vmem [thread:$0]  %s29, 4096, %s31, [#allocation7], 256, 256, 16
    $region9: #{tpu_custom_call.1} parent=1 // pred_fallthru
      _
    // Predicated region
    $region10: #{tpu_custom_call.1} parent=1 // pred_check
      _
    $region11: #{tpu_custom_call.1} parent=1 // pred_check_branch
      %38 = sbr.rel (0) target = $region13
    $region12: #{tpu_custom_call.1} parent=1 // pred_region
      %40 = vsyncadd [#allocation7], 0
      %s42 = sshll.u32 %s2, 4
      %s43 = int_to_ptr.hbm [resolvable:$true] %s42
      %s44 = sshll.u32 [#allocation8], 4
      %s45 = int_to_ptr.vmem [resolvable:$true] %s44
      %47 = dma.hbm_to_vmem [thread:$0]  %s43, 64, %s45, [#allocation7]
    $region13: #{tpu_custom_call.1} parent=1 // pred_fallthru
      _
    // Predicated region
    $region14: #{tpu_custom_call.1} parent=1 // pred_check
      _
    $region15: #{tpu_custom_call.1} parent=1 // pred_check_branch
      %49 = sbr.rel (0) target = $region17
    $region16: #{tpu_custom_call.1} parent=1 // pred_region
      %51 = dma.done [#allocation4], 1024
    $region17: #{tpu_custom_call.1} parent=1 // pred_fallthru
      _
    // Predicated region
    $region18: #{tpu_custom_call.1} parent=1 // pred_check
      _
    $region19: #{tpu_custom_call.1} parent=1 // pred_check_branch
      %53 = sbr.rel (0) target = $region21
    $region20: #{tpu_custom_call.1} parent=1 // pred_region
      %55 = dma.done [#allocation7], 4096
    $region21: #{tpu_custom_call.1} parent=1 // pred_fallthru
      _
    // Predicated region
    $region22: #{tpu_custom_call.1} parent=1 // pred_check
      _
    $region23: #{tpu_custom_call.1} parent=1 // pred_check_branch
      %57 = sbr.rel (0) target = $region25
    $region24: #{tpu_custom_call.1} parent=1 // pred_region
      %59 = dma.done [#allocation7], 64
    $region25: #{tpu_custom_call.1} parent=1 // pred_fallthru
      _
    %p60 = scmp.eq.s32.totalorder 0, 0
    // Predicated region
    $region26: #{tpu_custom_call.1} parent=1 // pred_check
      %p61 = pneg %p60
    $region27: #{tpu_custom_call.1} parent=1 // pred_check_branch
      %63 = sbr.rel (%p61) target = $region29
    $region28: #{tpu_custom_call.1} parent=1 // pred_region
      %64 = vst [vmem:[#allocation2] sm:$0xff] 0.0
      %65 = vst [vmem:[#allocation2 + $0x8] sm:$0xff] 0.0
      %66 = vst [vmem:[#allocation2 + $0x10] sm:$0xff] 0.0
      %67 = vst [vmem:[#allocation2 + $0x18] sm:$0xff] 0.0
      %68 = vst [vmem:[#allocation2 + $0x20] sm:$0xff] 0.0
      %69 = vst [vmem:[#allocation2 + $0x28] sm:$0xff] 0.0
      %70 = vst [vmem:[#allocation2 + $0x30] sm:$0xff] 0.0
      %71 = vst [vmem:[#allocation2 + $0x38] sm:$0xff] 0.0
      %72 = vst [vmem:[#allocation2 + $0x40] sm:$0xff] 0.0
      %73 = vst [vmem:[#allocation2 + $0x48] sm:$0xff] 0.0
      %74 = vst [vmem:[#allocation2 + $0x50] sm:$0xff] 0.0
      %75 = vst [vmem:[#allocation2 + $0x58] sm:$0xff] 0.0
      %76 = vst [vmem:[#allocation2 + $0x60] sm:$0xff] 0.0
      %77 = vst [vmem:[#allocation2 + $0x68] sm:$0xff] 0.0
      %78 = vst [vmem:[#allocation2 + $0x70] sm:$0xff] 0.0
      %79 = vst [vmem:[#allocation2 + $0x78] sm:$0xff] 0.0
      %80 = vst [vmem:[#allocation2 + $0x80] sm:$0xff] 0.0
      %81 = vst [vmem:[#allocation2 + $0x88] sm:$0xff] 0.0
      %82 = vst [vmem:[#allocation2 + $0x90] sm:$0xff] 0.0
      %83 = vst [vmem:[#allocation2 + $0x98] sm:$0xff] 0.0
      %84 = vst [vmem:[#allocation2 + $0xa0] sm:$0xff] 0.0
      %85 = vst [vmem:[#allocation2 + $0xa8] sm:$0xff] 0.0
      %86 = vst [vmem:[#allocation2 + $0xb0] sm:$0xff] 0.0
      %87 = vst [vmem:[#allocation2 + $0xb8] sm:$0xff] 0.0
      %88 = vst [vmem:[#allocation2 + $0xc0] sm:$0xff] 0.0
      %89 = vst [vmem:[#allocation2 + $0xc8] sm:$0xff] 0.0
      %90 = vst [vmem:[#allocation2 + $0xd0] sm:$0xff] 0.0
      %91 = vst [vmem:[#allocation2 + $0xd8] sm:$0xff] 0.0
      %92 = vst [vmem:[#allocation2 + $0xe0] sm:$0xff] 0.0
      %93 = vst [vmem:[#allocation2 + $0xe8] sm:$0xff] 0.0
      %94 = vst [vmem:[#allocation2 + $0xf0] sm:$0xff] 0.0
      %95 = vst [vmem:[#allocation2 + $0xf8] sm:$0xff] 0.0
      %96 = vst [vmem:[#allocation2 + $0x100] sm:$0xff] 0.0
      %97 = vst [vmem:[#allocation2 + $0x108] sm:$0xff] 0.0
      %98 = vst [vmem:[#allocation2 + $0x110] sm:$0xff] 0.0
      %99 = vst [vmem:[#allocation2 + $0x118] sm:$0xff] 0.0
      %100 = vst [vmem:[#allocation2 + $0x120] sm:$0xff] 0.0
      %101 = vst [vmem:[#allocation2 + $0x128] sm:$0xff] 0.0
      %102 = vst [vmem:[#allocation2 + $0x130] sm:$0xff] 0.0
      %103 = vst [vmem:[#allocation2 + $0x138] sm:$0xff] 0.0
      %104 = vst [vmem:[#allocation2 + $0x140] sm:$0xff] 0.0
      %105 = vst [vmem:[#allocation2 + $0x148] sm:$0xff] 0.0
      %106 = vst [vmem:[#allocation2 + $0x150] sm:$0xff] 0.0
      %107 = vst [vmem:[#allocation2 + $0x158] sm:$0xff] 0.0
      %108 = vst [vmem:[#allocation2 + $0x160] sm:$0xff] 0.0
      %109 = vst [vmem:[#allocation2 + $0x168] sm:$0xff] 0.0
      %110 = vst [vmem:[#allocation2 + $0x170] sm:$0xff] 0.0
      %111 = vst [vmem:[#allocation2 + $0x178] sm:$0xff] 0.0
      %112 = vst [vmem:[#allocation2 + $0x180] sm:$0xff] 0.0
      %113 = vst [vmem:[#allocation2 + $0x188] sm:$0xff] 0.0
      %114 = vst [vmem:[#allocation2 + $0x190] sm:$0xff] 0.0
      %115 = vst [vmem:[#allocation2 + $0x198] sm:$0xff] 0.0
      %116 = vst [vmem:[#allocation2 + $0x1a0] sm:$0xff] 0.0
      %117 = vst [vmem:[#allocation2 + $0x1a8] sm:$0xff] 0.0
      %118 = vst [vmem:[#allocation2 + $0x1b0] sm:$0xff] 0.0
      %119 = vst [vmem:[#allocation2 + $0x1b8] sm:$0xff] 0.0
      %120 = vst [vmem:[#allocation2 + $0x1c0] sm:$0xff] 0.0
      %121 = vst [vmem:[#allocation2 + $0x1c8] sm:$0xff] 0.0
      %122 = vst [vmem:[#allocation2 + $0x1d0] sm:$0xff] 0.0
      %123 = vst [vmem:[#allocation2 + $0x1d8] sm:$0xff] 0.0
      %124 = vst [vmem:[#allocation2 + $0x1e0] sm:$0xff] 0.0
      %125 = vst [vmem:[#allocation2 + $0x1e8] sm:$0xff] 0.0
      %126 = vst [vmem:[#allocation2 + $0x1f0] sm:$0xff] 0.0
      %127 = vst [vmem:[#allocation2 + $0x1f8] sm:$0xff] 0.0
    $region29: #{tpu_custom_call.1} parent=1 // pred_fallthru
      _
    %v128 = vld [vmem:[#allocation2] sm:$0xff]
    %v129 = vld [vmem:[#allocation2 + $0x8] sm:$0xff]
    %v130 = vld [vmem:[#allocation2 + $0x10] sm:$0xff]
    %v131 = vld [vmem:[#allocation2 + $0x18] sm:$0xff]
    %v132 = vld [vmem:[#allocation2 + $0x20] sm:$0xff]
    %v133 = vld [vmem:[#allocation2 + $0x28] sm:$0xff]
    %v134 = vld [vmem:[#allocation2 + $0x30] sm:$0xff]
    %v135 = vld [vmem:[#allocation2 + $0x38] sm:$0xff]
    %v136 = vld [vmem:[#allocation2 + $0x40] sm:$0xff]
    %v137 = vld [vmem:[#allocation2 + $0x48] sm:$0xff]
    %v138 = vld [vmem:[#allocation2 + $0x50] sm:$0xff]
    %v139 = vld [vmem:[#allocation2 + $0x58] sm:$0xff]
    %v140 = vld [vmem:[#allocation2 + $0x60] sm:$0xff]
    %v141 = vld [vmem:[#allocation2 + $0x68] sm:$0xff]
    %v142 = vld [vmem:[#allocation2 + $0x70] sm:$0xff]
    %v143 = vld [vmem:[#allocation2 + $0x78] sm:$0xff]
    %v144 = vld [vmem:[#allocation2 + $0x80] sm:$0xff]
    %v145 = vld [vmem:[#allocation2 + $0x88] sm:$0xff]
    %v146 = vld [vmem:[#allocation2 + $0x90] sm:$0xff]
    %v147 = vld [vmem:[#allocation2 + $0x98] sm:$0xff]
    %v148 = vld [vmem:[#allocation2 + $0xa0] sm:$0xff]
    %v149 = vld [vmem:[#allocation2 + $0xa8] sm:$0xff]
    %v150 = vld [vmem:[#allocation2 + $0xb0] sm:$0xff]
    %v151 = vld [vmem:[#allocation2 + $0xb8] sm:$0xff]
    %v152 = vld [vmem:[#allocation2 + $0xc0] sm:$0xff]
    %v153 = vld [vmem:[#allocation2 + $0xc8] sm:$0xff]
    %v154 = vld [vmem:[#allocation2 + $0xd0] sm:$0xff]
    %v155 = vld [vmem:[#allocation2 + $0xd8] sm:$0xff]
    %v156 = vld [vmem:[#allocation2 + $0xe0] sm:$0xff]
    %v157 = vld [vmem:[#allocation2 + $0xe8] sm:$0xff]
    %v158 = vld [vmem:[#allocation2 + $0xf0] sm:$0xff]
    %v159 = vld [vmem:[#allocation2 + $0xf8] sm:$0xff]
    %v160 = vld [vmem:[#allocation2 + $0x100] sm:$0xff]
    %v161 = vld [vmem:[#allocation2 + $0x108] sm:$0xff]
    %v162 = vld [vmem:[#allocation2 + $0x110] sm:$0xff]
    %v163 = vld [vmem:[#allocation2 + $0x118] sm:$0xff]
    %v164 = vld [vmem:[#allocation2 + $0x120] sm:$0xff]
    %v165 = vld [vmem:[#allocation2 + $0x128] sm:$0xff]
    %v166 = vld [vmem:[#allocation2 + $0x130] sm:$0xff]
    %v167 = vld [vmem:[#allocation2 + $0x138] sm:$0xff]
    %v168 = vld [vmem:[#allocation2 + $0x140] sm:$0xff]
    %v169 = vld [vmem:[#allocation2 + $0x148] sm:$0xff]
    %v170 = vld [vmem:[#allocation2 + $0x150] sm:$0xff]
    %v171 = vld [vmem:[#allocation2 + $0x158] sm:$0xff]
    %v172 = vld [vmem:[#allocation2 + $0x160] sm:$0xff]
    %v173 = vld [vmem:[#allocation2 + $0x168] sm:$0xff]
    %v174 = vld [vmem:[#allocation2 + $0x170] sm:$0xff]
    %v175 = vld [vmem:[#allocation2 + $0x178] sm:$0xff]
    %v176 = vld [vmem:[#allocation2 + $0x180] sm:$0xff]
    %v177 = vld [vmem:[#allocation2 + $0x188] sm:$0xff]
    %v178 = vld [vmem:[#allocation2 + $0x190] sm:$0xff]
    %v179 = vld [vmem:[#allocation2 + $0x198] sm:$0xff]
    %v180 = vld [vmem:[#allocation2 + $0x1a0] sm:$0xff]
    %v181 = vld [vmem:[#allocation2 + $0x1a8] sm:$0xff]
    %v182 = vld [vmem:[#allocation2 + $0x1b0] sm:$0xff]
    %v183 = vld [vmem:[#allocation2 + $0x1b8] sm:$0xff]
    %v184 = vld [vmem:[#allocation2 + $0x1c0] sm:$0xff]
    %v185 = vld [vmem:[#allocation2 + $0x1c8] sm:$0xff]
    %v186 = vld [vmem:[#allocation2 + $0x1d0] sm:$0xff]
    %v187 = vld [vmem:[#allocation2 + $0x1d8] sm:$0xff]
    %v188 = vld [vmem:[#allocation2 + $0x1e0] sm:$0xff]
    %v189 = vld [vmem:[#allocation2 + $0x1e8] sm:$0xff]
    %v190 = vld [vmem:[#allocation2 + $0x1f0] sm:$0xff]
    %v191 = vld [vmem:[#allocation2 + $0x1f8] sm:$0xff]
    %v192 = vld [vmem:[#allocation3] sm:$0xf]
    %v193 = vld [vmem:[#allocation3 + $0x4] sm:$0xf]
    %v194 = vld [vmem:[#allocation3 + $0x8] sm:$0xf]
    %v195 = vld [vmem:[#allocation3 + $0xc] sm:$0xf]
    %v196 = vld [vmem:[#allocation3 + $0x10] sm:$0xf]
    %v197 = vld [vmem:[#allocation3 + $0x14] sm:$0xf]
    %v198 = vld [vmem:[#allocation3 + $0x18] sm:$0xf]
    %v199 = vld [vmem:[#allocation3 + $0x1c] sm:$0xf]
    %v200 = vld [vmem:[#allocation3 + $0x20] sm:$0xf]
    %v201 = vld [vmem:[#allocation3 + $0x24] sm:$0xf]
    %v202 = vld [vmem:[#allocation3 + $0x28] sm:$0xf]
    %v203 = vld [vmem:[#allocation3 + $0x2c] sm:$0xf]
    %v204 = vld [vmem:[#allocation3 + $0x30] sm:$0xf]
    %v205 = vld [vmem:[#allocation3 + $0x34] sm:$0xf]
    %v206 = vld [vmem:[#allocation3 + $0x38] sm:$0xf]
    %v207 = vld [vmem:[#allocation3 + $0x3c] sm:$0xf]
    %v208 = vld [vmem:[#allocation6] sm:$0xff]
    %v209 = vld [vmem:[#allocation6 + $0x8] sm:$0xff]
    %v210 = vld [vmem:[#allocation6 + $0x10] sm:$0xff]
    %v211 = vld [vmem:[#allocation6 + $0x18] sm:$0xff]
    %v212 = vld [vmem:[#allocation6 + $0x20] sm:$0xff]
    %v213 = vld [vmem:[#allocation6 + $0x28] sm:$0xff]
    %v214 = vld [vmem:[#allocation6 + $0x30] sm:$0xff]
    %v215 = vld [vmem:[#allocation6 + $0x38] sm:$0xff]
    %v216 = vld [vmem:[#allocation6 + $0x40] sm:$0xff]
    %v217 = vld [vmem:[#allocation6 + $0x48] sm:$0xff]
    %v218 = vld [vmem:[#allocation6 + $0x50] sm:$0xff]
    %v219 = vld [vmem:[#allocation6 + $0x58] sm:$0xff]
    %v220 = vld [vmem:[#allocation6 + $0x60] sm:$0xff]
    %v221 = vld [vmem:[#allocation6 + $0x68] sm:$0xff]
    %v222 = vld [vmem:[#allocation6 + $0x70] sm:$0xff]
    %v223 = vld [vmem:[#allocation6 + $0x78] sm:$0xff]
    %v224 = vld [vmem:[#allocation6 + $0x80] sm:$0xff]
    %v225 = vld [vmem:[#allocation6 + $0x88] sm:$0xff]
    %v226 = vld [vmem:[#allocation6 + $0x90] sm:$0xff]
    %v227 = vld [vmem:[#allocation6 + $0x98] sm:$0xff]
    %v228 = vld [vmem:[#allocation6 + $0xa0] sm:$0xff]
    %v229 = vld [vmem:[#allocation6 + $0xa8] sm:$0xff]
    %v230 = vld [vmem:[#allocation6 + $0xb0] sm:$0xff]
    %v231 = vld [vmem:[#allocation6 + $0xb8] sm:$0xff]
    %v232 = vld [vmem:[#allocation6 + $0xc0] sm:$0xff]
    %v233 = vld [vmem:[#allocation6 + $0xc8] sm:$0xff]
    %v234 = vld [vmem:[#allocation6 + $0xd0] sm:$0xff]
    %v235 = vld [vmem:[#allocation6 + $0xd8] sm:$0xff]
    %v236 = vld [vmem:[#allocation6 + $0xe0] sm:$0xff]
    %v237 = vld [vmem:[#allocation6 + $0xe8] sm:$0xff]
    %v238 = vld [vmem:[#allocation6 + $0xf0] sm:$0xff]
    %v239 = vld [vmem:[#allocation6 + $0xf8] sm:$0xff]
    %v256 = vunpack.c.l.b16 %v192
    %v257 = vunpack.c.l.b16 %v193
    %v258 = vunpack.c.l.b16 %v194
    %v259 = vunpack.c.l.b16 %v195
    %v260 = vunpack.c.l.b16 %v196
    %v261 = vunpack.c.l.b16 %v197
    %v262 = vunpack.c.l.b16 %v198
    %v263 = vunpack.c.l.b16 %v199
    %v264 = vunpack.c.l.b16 %v200
    %v265 = vunpack.c.l.b16 %v201
    %v266 = vunpack.c.l.b16 %v202
    %v267 = vunpack.c.l.b16 %v203
    %v268 = vunpack.c.l.b16 %v204
    %v269 = vunpack.c.l.b16 %v205
    %v270 = vunpack.c.l.b16 %v206
    %v271 = vunpack.c.l.b16 %v207
    %v272 = vpack.c.b16 %v257, %v256
    %v273 = vpack.c.b16 %v259, %v258
    %v274 = vpack.c.b16 %v261, %v260
    %v275 = vpack.c.b16 %v263, %v262
    %v276 = vpack.c.b16 %v265, %v264
    %v277 = vpack.c.b16 %v267, %v266
    %v278 = vpack.c.b16 %v269, %v268
    %v279 = vpack.c.b16 %v271, %v270
    %v320 = vunpack.c.l.b16 %v208
    %v321 = vunpack.c.h.b16 %v208
    %v322 = vunpack.c.l.b16 %v209
    %v323 = vunpack.c.h.b16 %v209
    %v324 = vunpack.c.l.b16 %v210
    %v325 = vunpack.c.h.b16 %v210
    %v326 = vunpack.c.l.b16 %v211
    %v327 = vunpack.c.h.b16 %v211
    %v328 = vunpack.c.l.b16 %v212
    %v329 = vunpack.c.h.b16 %v212
    %v330 = vunpack.c.l.b16 %v213
    %v331 = vunpack.c.h.b16 %v213
    %v332 = vunpack.c.l.b16 %v214
    %v333 = vunpack.c.h.b16 %v214
    %v334 = vunpack.c.l.b16 %v215
    %v335 = vunpack.c.h.b16 %v215
    %v336 = vunpack.c.l.b16 %v216
    %v337 = vunpack.c.h.b16 %v216
    %v338 = vunpack.c.l.b16 %v217
    %v339 = vunpack.c.h.b16 %v217
    %v340 = vunpack.c.l.b16 %v218
    %v341 = vunpack.c.h.b16 %v218
    %v342 = vunpack.c.l.b16 %v219
    %v343 = vunpack.c.h.b16 %v219
    %v344 = vunpack.c.l.b16 %v220
    %v345 = vunpack.c.h.b16 %v220
    %v346 = vunpack.c.l.b16 %v221
    %v347 = vunpack.c.h.b16 %v221
    %v348 = vunpack.c.l.b16 %v222
    %v349 = vunpack.c.h.b16 %v222
    %v350 = vunpack.c.l.b16 %v223
    %v351 = vunpack.c.h.b16 %v223
    %v352 = vunpack.c.l.b16 %v224
    %v353 = vunpack.c.h.b16 %v224
    %v354 = vunpack.c.l.b16 %v225
    %v355 = vunpack.c.h.b16 %v225
    %v356 = vunpack.c.l.b16 %v226
    %v357 = vunpack.c.h.b16 %v226
    %v358 = vunpack.c.l.b16 %v227
    %v359 = vunpack.c.h.b16 %v227
    %v360 = vunpack.c.l.b16 %v228
    %v361 = vunpack.c.h.b16 %v228
    %v362 = vunpack.c.l.b16 %v229
    %v363 = vunpack.c.h.b16 %v229
    %v364 = vunpack.c.l.b16 %v230
    %v365 = vunpack.c.h.b16 %v230
    %v366 = vunpack.c.l.b16 %v231
    %v367 = vunpack.c.h.b16 %v231
    %v368 = vunpack.c.l.b16 %v232
    %v369 = vunpack.c.h.b16 %v232
    %v370 = vunpack.c.l.b16 %v233
    %v371 = vunpack.c.h.b16 %v233
    %v372 = vunpack.c.l.b16 %v234
    %v373 = vunpack.c.h.b16 %v234
    %v374 = vunpack.c.l.b16 %v235
    %v375 = vunpack.c.h.b16 %v235
    %v376 = vunpack.c.l.b16 %v236
    %v377 = vunpack.c.h.b16 %v236
    %v378 = vunpack.c.l.b16 %v237
    %v379 = vunpack.c.h.b16 %v237
    %v380 = vunpack.c.l.b16 %v238
    %v381 = vunpack.c.h.b16 %v238
    %v382 = vunpack.c.l.b16 %v239
    %v383 = vunpack.c.h.b16 %v239
    %v384 = vpack.c.b16 %v324, %v320
    %v385 = vpack.c.b16 %v325, %v321
    %v386 = vpack.c.b16 %v326, %v322
    %v387 = vpack.c.b16 %v327, %v323
    %v388 = vpack.c.b16 %v332, %v328
    %v389 = vpack.c.b16 %v333, %v329
    %v390 = vpack.c.b16 %v334, %v330
    %v391 = vpack.c.b16 %v335, %v331
    %v392 = vpack.c.b16 %v340, %v336
    %v393 = vpack.c.b16 %v341, %v337
    %v394 = vpack.c.b16 %v342, %v338
    %v395 = vpack.c.b16 %v343, %v339
    %v396 = vpack.c.b16 %v348, %v344
    %v397 = vpack.c.b16 %v349, %v345
    %v398 = vpack.c.b16 %v350, %v346
    %v399 = vpack.c.b16 %v351, %v347
    %v400 = vpack.c.b16 %v356, %v352
    %v401 = vpack.c.b16 %v357, %v353
    %v402 = vpack.c.b16 %v358, %v354
    %v403 = vpack.c.b16 %v359, %v355
    %v404 = vpack.c.b16 %v364, %v360
    %v405 = vpack.c.b16 %v365, %v361
    %v406 = vpack.c.b16 %v366, %v362
    %v407 = vpack.c.b16 %v367, %v363
    %v408 = vpack.c.b16 %v372, %v368
    %v409 = vpack.c.b16 %v373, %v369
    %v410 = vpack.c.b16 %v374, %v370
    %v411 = vpack.c.b16 %v375, %v371
    %v412 = vpack.c.b16 %v380, %v376
    %v413 = vpack.c.b16 %v381, %v377
    %v414 = vpack.c.b16 %v382, %v378
    %v415 = vpack.c.b16 %v383, %v379
    %448 = vmatpush.bf16.msra.mxu0 %v412
    %449 = vmatpush.bf16.msra.mxu0 %v408
    %450 = vmatpush.bf16.msra.mxu0 %v404
    %451 = vmatpush.bf16.msra.mxu0 %v400
    %452 = vmatpush.bf16.msra.mxu0 %v396
    %453 = vmatpush.bf16.msra.mxu0 %v392
    %454 = vmatpush.bf16.msra.mxu0 %v388
    %455 = vmatpush.bf16.msra.mxu0 %v384
    %456 = vmatmul.bf16.gmra.mxu0 %v272
    %v457 = vpop.f32.mrf.mxu0
    %v458 = vadd.f32 0.0, %v457
    %v459 = vpop.f32.mrf.mxu0
    %v460 = vadd.f32 0.0, %v459
    %461 = vmatmul.bf16.gmra.mxu0 %v273
    %v462 = vpop.f32.mrf.mxu0
    %v463 = vadd.f32 0.0, %v462
    %v464 = vpop.f32.mrf.mxu0
    %v465 = vadd.f32 0.0, %v464
    %466 = vmatmul.bf16.gmra.mxu0 %v274
    %v467 = vpop.f32.mrf.mxu0
    %v468 = vadd.f32 0.0, %v467
    %v469 = vpop.f32.mrf.mxu0
    %v470 = vadd.f32 0.0, %v469
    %471 = vmatmul.bf16.gmra.mxu0 %v275
    %v472 = vpop.f32.mrf.mxu0
    %v473 = vadd.f32 0.0, %v472
    %v474 = vpop.f32.mrf.mxu0
    %v475 = vadd.f32 0.0, %v474
    %476 = vmatmul.bf16.gmra.mxu0 %v276
    %v477 = vpop.f32.mrf.mxu0
    %v478 = vadd.f32 0.0, %v477
    %v479 = vpop.f32.mrf.mxu0
    %v480 = vadd.f32 0.0, %v479
    %481 = vmatmul.bf16.gmra.mxu0 %v277
    %v482 = vpop.f32.mrf.mxu0
    %v483 = vadd.f32 0.0, %v482
    %v484 = vpop.f32.mrf.mxu0
    %v485 = vadd.f32 0.0, %v484
    %486 = vmatmul.bf16.gmra.mxu0 %v278
    %v487 = vpop.f32.mrf.mxu0
    %v488 = vadd.f32 0.0, %v487
    %v489 = vpop.f32.mrf.mxu0
    %v490 = vadd.f32 0.0, %v489
    %491 = vmatmul.bf16.gmra.mxu0 %v279
    %v492 = vpop.f32.mrf.mxu0
    %v493 = vadd.f32 0.0, %v492
    %v494 = vpop.f32.mrf.mxu0
    %v495 = vadd.f32 0.0, %v494
    %496 = vdwg.mxu0
    %497 = vmatpush.bf16.msra.mxu0 %v413
    %498 = vmatpush.bf16.msra.mxu0 %v409
    %499 = vmatpush.bf16.msra.mxu0 %v405
    %500 = vmatpush.bf16.msra.mxu0 %v401
    %501 = vmatpush.bf16.msra.mxu0 %v397
    %502 = vmatpush.bf16.msra.mxu0 %v393
    %503 = vmatpush.bf16.msra.mxu0 %v389
    %504 = vmatpush.bf16.msra.mxu0 %v385
    %505 = vmatmul.bf16.gmra.mxu0 %v272
    %v506 = vpop.f32.mrf.mxu0
    %v507 = vadd.f32 0.0, %v506
    %v508 = vpop.f32.mrf.mxu0
    %v509 = vadd.f32 0.0, %v508
    %510 = vmatmul.bf16.gmra.mxu0 %v273
    %v511 = vpop.f32.mrf.mxu0
    %v512 = vadd.f32 0.0, %v511
    %v513 = vpop.f32.mrf.mxu0
    %v514 = vadd.f32 0.0, %v513
    %515 = vmatmul.bf16.gmra.mxu0 %v274
    %v516 = vpop.f32.mrf.mxu0
    %v517 = vadd.f32 0.0, %v516
    %v518 = vpop.f32.mrf.mxu0
    %v519 = vadd.f32 0.0, %v518
    %520 = vmatmul.bf16.gmra.mxu0 %v275
    %v521 = vpop.f32.mrf.mxu0
    %v522 = vadd.f32 0.0, %v521
    %v523 = vpop.f32.mrf.mxu0
    %v524 = vadd.f32 0.0, %v523
    %525 = vmatmul.bf16.gmra.mxu0 %v276
    %v526 = vpop.f32.mrf.mxu0
    %v527 = vadd.f32 0.0, %v526
    %v528 = vpop.f32.mrf.mxu0
    %v529 = vadd.f32 0.0, %v528
    %530 = vmatmul.bf16.gmra.mxu0 %v277
    %v531 = vpop.f32.mrf.mxu0
    %v532 = vadd.f32 0.0, %v531
    %v533 = vpop.f32.mrf.mxu0
    %v534 = vadd.f32 0.0, %v533
    %535 = vmatmul.bf16.gmra.mxu0 %v278
    %v536 = vpop.f32.mrf.mxu0
    %v537 = vadd.f32 0.0, %v536
    %v538 = vpop.f32.mrf.mxu0
    %v539 = vadd.f32 0.0, %v538
    %540 = vmatmul.bf16.gmra.mxu0 %v279
    %v541 = vpop.f32.mrf.mxu0
    %v542 = vadd.f32 0.0, %v541
    %v543 = vpop.f32.mrf.mxu0
    %v544 = vadd.f32 0.0, %v543
    %545 = vdwg.mxu0
    %546 = vmatpush.bf16.msra.mxu0 %v414
    %547 = vmatpush.bf16.msra.mxu0 %v410
    %548 = vmatpush.bf16.msra.mxu0 %v406
    %549 = vmatpush.bf16.msra.mxu0 %v402
    %550 = vmatpush.bf16.msra.mxu0 %v398
    %551 = vmatpush.bf16.msra.mxu0 %v394
    %552 = vmatpush.bf16.msra.mxu0 %v390
    %553 = vmatpush.bf16.msra.mxu0 %v386
    %554 = vmatmul.bf16.gmra.mxu0 %v272
    %v555 = vpop.f32.mrf.mxu0
    %v556 = vadd.f32 0.0, %v555
    %v557 = vpop.f32.mrf.mxu0
    %v558 = vadd.f32 0.0, %v557
    %559 = vmatmul.bf16.gmra.mxu0 %v273
    %v560 = vpop.f32.mrf.mxu0
    %v561 = vadd.f32 0.0, %v560
    %v562 = vpop.f32.mrf.mxu0
    %v563 = vadd.f32 0.0, %v562
    %564 = vmatmul.bf16.gmra.mxu0 %v274
    %v565 = vpop.f32.mrf.mxu0
    %v566 = vadd.f32 0.0, %v565
    %v567 = vpop.f32.mrf.mxu0
    %v568 = vadd.f32 0.0, %v567
    %569 = vmatmul.bf16.gmra.mxu0 %v275
    %v570 = vpop.f32.mrf.mxu0
    %v571 = vadd.f32 0.0, %v570
    %v572 = vpop.f32.mrf.mxu0
    %v573 = vadd.f32 0.0, %v572
    %574 = vmatmul.bf16.gmra.mxu0 %v276
    %v575 = vpop.f32.mrf.mxu0
    %v576 = vadd.f32 0.0, %v575
    %v577 = vpop.f32.mrf.mxu0
    %v578 = vadd.f32 0.0, %v577
    %579 = vmatmul.bf16.gmra.mxu0 %v277
    %v580 = vpop.f32.mrf.mxu0
    %v581 = vadd.f32 0.0, %v580
    %v582 = vpop.f32.mrf.mxu0
    %v583 = vadd.f32 0.0, %v582
    %584 = vmatmul.bf16.gmra.mxu0 %v278
    %v585 = vpop.f32.mrf.mxu0
    %v586 = vadd.f32 0.0, %v585
    %v587 = vpop.f32.mrf.mxu0
    %v588 = vadd.f32 0.0, %v587
    %589 = vmatmul.bf16.gmra.mxu0 %v279
    %v590 = vpop.f32.mrf.mxu0
    %v591 = vadd.f32 0.0, %v590
    %v592 = vpop.f32.mrf.mxu0
    %v593 = vadd.f32 0.0, %v592
    %594 = vdwg.mxu0
    %595 = vmatpush.bf16.msra.mxu0 %v415
    %596 = vmatpush.bf16.msra.mxu0 %v411
    %597 = vmatpush.bf16.msra.mxu0 %v407
    %598 = vmatpush.bf16.msra.mxu0 %v403
    %599 = vmatpush.bf16.msra.mxu0 %v399
    %600 = vmatpush.bf16.msra.mxu0 %v395
    %601 = vmatpush.bf16.msra.mxu0 %v391
    %602 = vmatpush.bf16.msra.mxu0 %v387
    %603 = vmatmul.bf16.gmra.mxu0 %v272
    %v604 = vpop.f32.mrf.mxu0
    %v605 = vadd.f32 0.0, %v604
    %v606 = vpop.f32.mrf.mxu0
    %v607 = vadd.f32 0.0, %v606
    %608 = vmatmul.bf16.gmra.mxu0 %v273
    %v609 = vpop.f32.mrf.mxu0
    %v610 = vadd.f32 0.0, %v609
    %v611 = vpop.f32.mrf.mxu0
    %v612 = vadd.f32 0.0, %v611
    %613 = vmatmul.bf16.gmra.mxu0 %v274
    %v614 = vpop.f32.mrf.mxu0
    %v615 = vadd.f32 0.0, %v614
    %v616 = vpop.f32.mrf.mxu0
    %v617 = vadd.f32 0.0, %v616
    %618 = vmatmul.bf16.gmra.mxu0 %v275
    %v619 = vpop.f32.mrf.mxu0
    %v620 = vadd.f32 0.0, %v619
    %v621 = vpop.f32.mrf.mxu0
    %v622 = vadd.f32 0.0, %v621
    %623 = vmatmul.bf16.gmra.mxu0 %v276
    %v624 = vpop.f32.mrf.mxu0
    %v625 = vadd.f32 0.0, %v624
    %v626 = vpop.f32.mrf.mxu0
    %v627 = vadd.f32 0.0, %v626
    %628 = vmatmul.bf16.gmra.mxu0 %v277
    %v629 = vpop.f32.mrf.mxu0
    %v630 = vadd.f32 0.0, %v629
    %v631 = vpop.f32.mrf.mxu0
    %v632 = vadd.f32 0.0, %v631
    %633 = vmatmul.bf16.gmra.mxu0 %v278
    %v634 = vpop.f32.mrf.mxu0
    %v635 = vadd.f32 0.0, %v634
    %v636 = vpop.f32.mrf.mxu0
    %v637 = vadd.f32 0.0, %v636
    %638 = vmatmul.bf16.gmra.mxu0 %v279
    %v639 = vpop.f32.mrf.mxu0
    %v640 = vadd.f32 0.0, %v639
    %v641 = vpop.f32.mrf.mxu0
    %v642 = vadd.f32 0.0, %v641
    %643 = vdwg.mxu0
    %v644 = vadd.f32 %v128, %v458
    %v645 = vadd.f32 %v129, %v507
    %v646 = vadd.f32 %v130, %v556
    %v647 = vadd.f32 %v131, %v605
    %v648 = vadd.f32 %v132, %v460
    %v649 = vadd.f32 %v133, %v509
    %v650 = vadd.f32 %v134, %v558
    %v651 = vadd.f32 %v135, %v607
    %v652 = vadd.f32 %v136, %v463
    %v653 = vadd.f32 %v137, %v512
    %v654 = vadd.f32 %v138, %v561
    %v655 = vadd.f32 %v139, %v610
    %v656 = vadd.f32 %v140, %v465
    %v657 = vadd.f32 %v141, %v514
    %v658 = vadd.f32 %v142, %v563
    %v659 = vadd.f32 %v143, %v612
    %v660 = vadd.f32 %v144, %v468
    %v661 = vadd.f32 %v145, %v517
    %v662 = vadd.f32 %v146, %v566
    %v663 = vadd.f32 %v147, %v615
    %v664 = vadd.f32 %v148, %v470
    %v665 = vadd.f32 %v149, %v519
    %v666 = vadd.f32 %v150, %v568
    %v667 = vadd.f32 %v151, %v617
    %v668 = vadd.f32 %v152, %v473
    %v669 = vadd.f32 %v153, %v522
    %v670 = vadd.f32 %v154, %v571
    %v671 = vadd.f32 %v155, %v620
    %v672 = vadd.f32 %v156, %v475
    %v673 = vadd.f32 %v157, %v524
    %v674 = vadd.f32 %v158, %v573
    %v675 = vadd.f32 %v159, %v622
    %v676 = vadd.f32 %v160, %v478
    %v677 = vadd.f32 %v161, %v527
    %v678 = vadd.f32 %v162, %v576
    %v679 = vadd.f32 %v163, %v625
    %v680 = vadd.f32 %v164, %v480
    %v681 = vadd.f32 %v165, %v529
    %v682 = vadd.f32 %v166, %v578
    %v683 = vadd.f32 %v167, %v627
    %v684 = vadd.f32 %v168, %v483
    %v685 = vadd.f32 %v169, %v532
    %v686 = vadd.f32 %v170, %v581
    %v687 = vadd.f32 %v171, %v630
    %v688 = vadd.f32 %v172, %v485
    %v689 = vadd.f32 %v173, %v534
    %v690 = vadd.f32 %v174, %v583
    %v691 = vadd.f32 %v175, %v632
    %v692 = vadd.f32 %v176, %v488
    %v693 = vadd.f32 %v177, %v537
    %v694 = vadd.f32 %v178, %v586
    %v695 = vadd.f32 %v179, %v635
    %v696 = vadd.f32 %v180, %v490
    %v697 = vadd.f32 %v181, %v539
    %v698 = vadd.f32 %v182, %v588
    %v699 = vadd.f32 %v183, %v637
    %v700 = vadd.f32 %v184, %v493
    %v701 = vadd.f32 %v185, %v542
    %v702 = vadd.f32 %v186, %v591
    %v703 = vadd.f32 %v187, %v640
    %v704 = vadd.f32 %v188, %v495
    %v705 = vadd.f32 %v189, %v544
    %v706 = vadd.f32 %v190, %v593
    %v707 = vadd.f32 %v191, %v642
    %708 = vst [vmem:[#allocation2] sm:$0xff] %v644
    %709 = vst [vmem:[#allocation2 + $0x8] sm:$0xff] %v645
    %710 = vst [vmem:[#allocation2 + $0x10] sm:$0xff] %v646
    %711 = vst [vmem:[#allocation2 + $0x18] sm:$0xff] %v647
    %712 = vst [vmem:[#allocation2 + $0x20] sm:$0xff] %v648
    %713 = vst [vmem:[#allocation2 + $0x28] sm:$0xff] %v649
    %714 = vst [vmem:[#allocation2 + $0x30] sm:$0xff] %v650
    %715 = vst [vmem:[#allocation2 + $0x38] sm:$0xff] %v651
    %716 = vst [vmem:[#allocation2 + $0x40] sm:$0xff] %v652
    %717 = vst [vmem:[#allocation2 + $0x48] sm:$0xff] %v653
    %718 = vst [vmem:[#allocation2 + $0x50] sm:$0xff] %v654
    %719 = vst [vmem:[#allocation2 + $0x58] sm:$0xff] %v655
    %720 = vst [vmem:[#allocation2 + $0x60] sm:$0xff] %v656
    %721 = vst [vmem:[#allocation2 + $0x68] sm:$0xff] %v657
    %722 = vst [vmem:[#allocation2 + $0x70] sm:$0xff] %v658
    %723 = vst [vmem:[#allocation2 + $0x78] sm:$0xff] %v659
    %724 = vst [vmem:[#allocation2 + $0x80] sm:$0xff] %v660
    %725 = vst [vmem:[#allocation2 + $0x88] sm:$0xff] %v661
    %726 = vst [vmem:[#allocation2 + $0x90] sm:$0xff] %v662
    %727 = vst [vmem:[#allocation2 + $0x98] sm:$0xff] %v663
    %728 = vst [vmem:[#allocation2 + $0xa0] sm:$0xff] %v664
    %729 = vst [vmem:[#allocation2 + $0xa8] sm:$0xff] %v665
    %730 = vst [vmem:[#allocation2 + $0xb0] sm:$0xff] %v666
    %731 = vst [vmem:[#allocation2 + $0xb8] sm:$0xff] %v667
    %732 = vst [vmem:[#allocation2 + $0xc0] sm:$0xff] %v668
    %733 = vst [vmem:[#allocation2 + $0xc8] sm:$0xff] %v669
    %734 = vst [vmem:[#allocation2 + $0xd0] sm:$0xff] %v670
    %735 = vst [vmem:[#allocation2 + $0xd8] sm:$0xff] %v671
    %736 = vst [vmem:[#allocation2 + $0xe0] sm:$0xff] %v672
    %737 = vst [vmem:[#allocation2 + $0xe8] sm:$0xff] %v673
    %738 = vst [vmem:[#allocation2 + $0xf0] sm:$0xff] %v674
    %739 = vst [vmem:[#allocation2 + $0xf8] sm:$0xff] %v675
    %740 = vst [vmem:[#allocation2 + $0x100] sm:$0xff] %v676
    %741 = vst [vmem:[#allocation2 + $0x108] sm:$0xff] %v677
    %742 = vst [vmem:[#allocation2 + $0x110] sm:$0xff] %v678
    %743 = vst [vmem:[#allocation2 + $0x118] sm:$0xff] %v679
    %744 = vst [vmem:[#allocation2 + $0x120] sm:$0xff] %v680
    %745 = vst [vmem:[#allocation2 + $0x128] sm:$0xff] %v681
    %746 = vst [vmem:[#allocation2 + $0x130] sm:$0xff] %v682
    %747 = vst [vmem:[#allocation2 + $0x138] sm:$0xff] %v683
    %748 = vst [vmem:[#allocation2 + $0x140] sm:$0xff] %v684
    %749 = vst [vmem:[#allocation2 + $0x148] sm:$0xff] %v685
    %750 = vst [vmem:[#allocation2 + $0x150] sm:$0xff] %v686
    %751 = vst [vmem:[#allocation2 + $0x158] sm:$0xff] %v687
    %752 = vst [vmem:[#allocation2 + $0x160] sm:$0xff] %v688
    %753 = vst [vmem:[#allocation2 + $0x168] sm:$0xff] %v689
    %754 = vst [vmem:[#allocation2 + $0x170] sm:$0xff] %v690
    %755 = vst [vmem:[#allocation2 + $0x178] sm:$0xff] %v691
    %756 = vst [vmem:[#allocation2 + $0x180] sm:$0xff] %v692
    %757 = vst [vmem:[#allocation2 + $0x188] sm:$0xff] %v693
    %758 = vst [vmem:[#allocation2 + $0x190] sm:$0xff] %v694
    %759 = vst [vmem:[#allocation2 + $0x198] sm:$0xff] %v695
    %760 = vst [vmem:[#allocation2 + $0x1a0] sm:$0xff] %v696
    %761 = vst [vmem:[#allocation2 + $0x1a8] sm:$0xff] %v697
    %762 = vst [vmem:[#allocation2 + $0x1b0] sm:$0xff] %v698
    %763 = vst [vmem:[#allocation2 + $0x1b8] sm:$0xff] %v699
    %764 = vst [vmem:[#allocation2 + $0x1c0] sm:$0xff] %v700
    %765 = vst [vmem:[#allocation2 + $0x1c8] sm:$0xff] %v701
    %766 = vst [vmem:[#allocation2 + $0x1d0] sm:$0xff] %v702
    %767 = vst [vmem:[#allocation2 + $0x1d8] sm:$0xff] %v703
    %768 = vst [vmem:[#allocation2 + $0x1e0] sm:$0xff] %v704
    %769 = vst [vmem:[#allocation2 + $0x1e8] sm:$0xff] %v705
    %770 = vst [vmem:[#allocation2 + $0x1f0] sm:$0xff] %v706
    %771 = vst [vmem:[#allocation2 + $0x1f8] sm:$0xff] %v707
    // Predicated region
    $region30: #{tpu_custom_call.1} parent=1 // pred_check
      %p772 = pneg %p60
    $region31: #{tpu_custom_call.1} parent=1 // pred_check_branch
      %774 = sbr.rel (%p772) target = $region33
    $region32: #{tpu_custom_call.1} parent=1 // pred_region
      %v775 = vld [vmem:[#allocation2] sm:$0xff]
      %v776 = vld [vmem:[#allocation2 + $0x8] sm:$0xff]
      %v777 = vld [vmem:[#allocation2 + $0x10] sm:$0xff]
      %v778 = vld [vmem:[#allocation2 + $0x18] sm:$0xff]
      %v779 = vld [vmem:[#allocation2 + $0x20] sm:$0xff]
      %v780 = vld [vmem:[#allocation2 + $0x28] sm:$0xff]
      %v781 = vld [vmem:[#allocation2 + $0x30] sm:$0xff]
      %v782 = vld [vmem:[#allocation2 + $0x38] sm:$0xff]
      %v783 = vld [vmem:[#allocation2 + $0x40] sm:$0xff]
      %v784 = vld [vmem:[#allocation2 + $0x48] sm:$0xff]
      %v785 = vld [vmem:[#allocation2 + $0x50] sm:$0xff]
      %v786 = vld [vmem:[#allocation2 + $0x58] sm:$0xff]
      %v787 = vld [vmem:[#allocation2 + $0x60] sm:$0xff]
      %v788 = vld [vmem:[#allocation2 + $0x68] sm:$0xff]
      %v789 = vld [vmem:[#allocation2 + $0x70] sm:$0xff]
      %v790 = vld [vmem:[#allocation2 + $0x78] sm:$0xff]
      %v791 = vld [vmem:[#allocation2 + $0x80] sm:$0xff]
      %v792 = vld [vmem:[#allocation2 + $0x88] sm:$0xff]
      %v793 = vld [vmem:[#allocation2 + $0x90] sm:$0xff]
      %v794 = vld [vmem:[#allocation2 + $0x98] sm:$0xff]
      %v795 = vld [vmem:[#allocation2 + $0xa0] sm:$0xff]
      %v796 = vld [vmem:[#allocation2 + $0xa8] sm:$0xff]
      %v797 = vld [vmem:[#allocation2 + $0xb0] sm:$0xff]
      %v798 = vld [vmem:[#allocation2 + $0xb8] sm:$0xff]
      %v799 = vld [vmem:[#allocation2 + $0xc0] sm:$0xff]
      %v800 = vld [vmem:[#allocation2 + $0xc8] sm:$0xff]
      %v801 = vld [vmem:[#allocation2 + $0xd0] sm:$0xff]
      %v802 = vld [vmem:[#allocation2 + $0xd8] sm:$0xff]
      %v803 = vld [vmem:[#allocation2 + $0xe0] sm:$0xff]
      %v804 = vld [vmem:[#allocation2 + $0xe8] sm:$0xff]
      %v805 = vld [vmem:[#allocation2 + $0xf0] sm:$0xff]
      %v806 = vld [vmem:[#allocation2 + $0xf8] sm:$0xff]
      %v807 = vld [vmem:[#allocation2 + $0x100] sm:$0xff]
      %v808 = vld [vmem:[#allocation2 + $0x108] sm:$0xff]
      %v809 = vld [vmem:[#allocation2 + $0x110] sm:$0xff]
      %v810 = vld [vmem:[#allocation2 + $0x118] sm:$0xff]
      %v811 = vld [vmem:[#allocation2 + $0x120] sm:$0xff]
      %v812 = vld [vmem:[#allocation2 + $0x128] sm:$0xff]
      %v813 = vld [vmem:[#allocation2 + $0x130] sm:$0xff]
      %v814 = vld [vmem:[#allocation2 + $0x138] sm:$0xff]
      %v815 = vld [vmem:[#allocation2 + $0x140] sm:$0xff]
      %v816 = vld [vmem:[#allocation2 + $0x148] sm:$0xff]
      %v817 = vld [vmem:[#allocation2 + $0x150] sm:$0xff]
      %v818 = vld [vmem:[#allocation2 + $0x158] sm:$0xff]
      %v819 = vld [vmem:[#allocation2 + $0x160] sm:$0xff]
      %v820 = vld [vmem:[#allocation2 + $0x168] sm:$0xff]
      %v821 = vld [vmem:[#allocation2 + $0x170] sm:$0xff]
      %v822 = vld [vmem:[#allocation2 + $0x178] sm:$0xff]
      %v823 = vld [vmem:[#allocation2 + $0x180] sm:$0xff]
      %v824 = vld [vmem:[#allocation2 + $0x188] sm:$0xff]
      %v825 = vld [vmem:[#allocation2 + $0x190] sm:$0xff]
      %v826 = vld [vmem:[#allocation2 + $0x198] sm:$0xff]
      %v827 = vld [vmem:[#allocation2 + $0x1a0] sm:$0xff]
      %v828 = vld [vmem:[#allocation2 + $0x1a8] sm:$0xff]
      %v829 = vld [vmem:[#allocation2 + $0x1b0] sm:$0xff]
      %v830 = vld [vmem:[#allocation2 + $0x1b8] sm:$0xff]
      %v831 = vld [vmem:[#allocation2 + $0x1c0] sm:$0xff]
      %v832 = vld [vmem:[#allocation2 + $0x1c8] sm:$0xff]
      %v833 = vld [vmem:[#allocation2 + $0x1d0] sm:$0xff]
      %v834 = vld [vmem:[#allocation2 + $0x1d8] sm:$0xff]
      %v835 = vld [vmem:[#allocation2 + $0x1e0] sm:$0xff]
      %v836 = vld [vmem:[#allocation2 + $0x1e8] sm:$0xff]
      %v837 = vld [vmem:[#allocation2 + $0x1f0] sm:$0xff]
      %v838 = vld [vmem:[#allocation2 + $0x1f8] sm:$0xff]
      %v839 = vld [vmem:[#allocation8] sm:$0xf]
      %v841 = vperm.slane %v839, 0
      %v842 = vperm.slane %v839, 1
      %v843 = vperm.slane %v839, 2
      %v844 = vperm.slane %v839, 3
      %v849 = vadd.f32 %v775, %v841
      %v850 = vadd.f32 %v776, %v842
      %v851 = vadd.f32 %v777, %v843
      %v852 = vadd.f32 %v778, %v844
      %v853 = vadd.f32 %v779, %v841
      %v854 = vadd.f32 %v780, %v842
      %v855 = vadd.f32 %v781, %v843
      %v856 = vadd.f32 %v782, %v844
      %v857 = vadd.f32 %v783, %v841
      %v858 = vadd.f32 %v784, %v842
      %v859 = vadd.f32 %v785, %v843
      %v860 = vadd.f32 %v786, %v844
      %v861 = vadd.f32 %v787, %v841
      %v862 = vadd.f32 %v788, %v842
      %v863 = vadd.f32 %v789, %v843
      %v864 = vadd.f32 %v790, %v844
      %v865 = vadd.f32 %v791, %v841
      %v866 = vadd.f32 %v792, %v842
      %v867 = vadd.f32 %v793, %v843
      %v868 = vadd.f32 %v794, %v844
      %v869 = vadd.f32 %v795, %v841
      %v870 = vadd.f32 %v796, %v842
      %v871 = vadd.f32 %v797, %v843
      %v872 = vadd.f32 %v798, %v844
      %v873 = vadd.f32 %v799, %v841
      %v874 = vadd.f32 %v800, %v842
      %v875 = vadd.f32 %v801, %v843
      %v876 = vadd.f32 %v802, %v844
      %v877 = vadd.f32 %v803, %v841
      %v878 = vadd.f32 %v804, %v842
      %v879 = vadd.f32 %v805, %v843
      %v880 = vadd.f32 %v806, %v844
      %v881 = vadd.f32 %v807, %v841
      %v882 = vadd.f32 %v808, %v842
      %v883 = vadd.f32 %v809, %v843
      %v884 = vadd.f32 %v810, %v844
      %v885 = vadd.f32 %v811, %v841
      %v886 = vadd.f32 %v812, %v842
      %v887 = vadd.f32 %v813, %v843
      %v888 = vadd.f32 %v814, %v844
      %v889 = vadd.f32 %v815, %v841
      %v890 = vadd.f32 %v816, %v842
      %v891 = vadd.f32 %v817, %v843
      %v892 = vadd.f32 %v818, %v844
      %v893 = vadd.f32 %v819, %v841
      %v894 = vadd.f32 %v820, %v842
      %v895 = vadd.f32 %v821, %v843
      %v896 = vadd.f32 %v822, %v844
      %v897 = vadd.f32 %v823, %v841
      %v898 = vadd.f32 %v824, %v842
      %v899 = vadd.f32 %v825, %v843
      %v900 = vadd.f32 %v826, %v844
      %v901 = vadd.f32 %v827, %v841
      %v902 = vadd.f32 %v828, %v842
      %v903 = vadd.f32 %v829, %v843
      %v904 = vadd.f32 %v830, %v844
      %v905 = vadd.f32 %v831, %v841
      %v906 = vadd.f32 %v832, %v842
      %v907 = vadd.f32 %v833, %v843
      %v908 = vadd.f32 %v834, %v844
      %v909 = vadd.f32 %v835, %v841
      %v910 = vadd.f32 %v836, %v842
      %v911 = vadd.f32 %v837, %v843
      %v912 = vadd.f32 %v838, %v844
      %v913 = vpack.c.bf16 %v850, %v849
      %v914 = vpack.c.bf16 %v852, %v851
      %v915 = vpack.c.bf16 %v854, %v853
      %v916 = vpack.c.bf16 %v856, %v855
      %v917 = vpack.c.bf16 %v858, %v857
      %v918 = vpack.c.bf16 %v860, %v859
      %v919 = vpack.c.bf16 %v862, %v861
      %v920 = vpack.c.bf16 %v864, %v863
      %v921 = vpack.c.bf16 %v866, %v865
      %v922 = vpack.c.bf16 %v868, %v867
      %v923 = vpack.c.bf16 %v870, %v869
      %v924 = vpack.c.bf16 %v872, %v871
      %v925 = vpack.c.bf16 %v874, %v873
      %v926 = vpack.c.bf16 %v876, %v875
      %v927 = vpack.c.bf16 %v878, %v877
      %v928 = vpack.c.bf16 %v880, %v879
      %v929 = vpack.c.bf16 %v882, %v881
      %v930 = vpack.c.bf16 %v884, %v883
      %v931 = vpack.c.bf16 %v886, %v885
      %v932 = vpack.c.bf16 %v888, %v887
      %v933 = vpack.c.bf16 %v890, %v889
      %v934 = vpack.c.bf16 %v892, %v891
      %v935 = vpack.c.bf16 %v894, %v893
      %v936 = vpack.c.bf16 %v896, %v895
      %v937 = vpack.c.bf16 %v898, %v897
      %v938 = vpack.c.bf16 %v900, %v899
      %v939 = vpack.c.bf16 %v902, %v901
      %v940 = vpack.c.bf16 %v904, %v903
      %v941 = vpack.c.bf16 %v906, %v905
      %v942 = vpack.c.bf16 %v908, %v907
      %v943 = vpack.c.bf16 %v910, %v909
      %v944 = vpack.c.bf16 %v912, %v911
      %945 = vst [vmem:[#allocation9] sm:$0xff] %v913
      %946 = vst [vmem:[#allocation9 + $0x8] sm:$0xff] %v914
      %947 = vst [vmem:[#allocation9 + $0x10] sm:$0xff] %v915
      %948 = vst [vmem:[#allocation9 + $0x18] sm:$0xff] %v916
      %949 = vst [vmem:[#allocation9 + $0x20] sm:$0xff] %v917
      %950 = vst [vmem:[#allocation9 + $0x28] sm:$0xff] %v918
      %951 = vst [vmem:[#allocation9 + $0x30] sm:$0xff] %v919
      %952 = vst [vmem:[#allocation9 + $0x38] sm:$0xff] %v920
      %953 = vst [vmem:[#allocation9 + $0x40] sm:$0xff] %v921
      %954 = vst [vmem:[#allocation9 + $0x48] sm:$0xff] %v922
      %955 = vst [vmem:[#allocation9 + $0x50] sm:$0xff] %v923
      %956 = vst [vmem:[#allocation9 + $0x58] sm:$0xff] %v924
      %957 = vst [vmem:[#allocation9 + $0x60] sm:$0xff] %v925
      %958 = vst [vmem:[#allocation9 + $0x68] sm:$0xff] %v926
      %959 = vst [vmem:[#allocation9 + $0x70] sm:$0xff] %v927
      %960 = vst [vmem:[#allocation9 + $0x78] sm:$0xff] %v928
      %961 = vst [vmem:[#allocation9 + $0x80] sm:$0xff] %v929
      %962 = vst [vmem:[#allocation9 + $0x88] sm:$0xff] %v930
      %963 = vst [vmem:[#allocation9 + $0x90] sm:$0xff] %v931
      %964 = vst [vmem:[#allocation9 + $0x98] sm:$0xff] %v932
      %965 = vst [vmem:[#allocation9 + $0xa0] sm:$0xff] %v933
      %966 = vst [vmem:[#allocation9 + $0xa8] sm:$0xff] %v934
      %967 = vst [vmem:[#allocation9 + $0xb0] sm:$0xff] %v935
      %968 = vst [vmem:[#allocation9 + $0xb8] sm:$0xff] %v936
      %969 = vst [vmem:[#allocation9 + $0xc0] sm:$0xff] %v937
      %970 = vst [vmem:[#allocation9 + $0xc8] sm:$0xff] %v938
      %971 = vst [vmem:[#allocation9 + $0xd0] sm:$0xff] %v939
      %972 = vst [vmem:[#allocation9 + $0xd8] sm:$0xff] %v940
      %973 = vst [vmem:[#allocation9 + $0xe0] sm:$0xff] %v941
      %974 = vst [vmem:[#allocation9 + $0xe8] sm:$0xff] %v942
      %975 = vst [vmem:[#allocation9 + $0xf0] sm:$0xff] %v943
      %976 = vst [vmem:[#allocation9 + $0xf8] sm:$0xff] %v944
    $region33: #{tpu_custom_call.1} parent=1 // pred_fallthru
      _
    // Predicated region
    $region34: #{tpu_custom_call.1} parent=1 // pred_check
      _
    $region35: #{tpu_custom_call.1} parent=1 // pred_check_branch
      %978 = sbr.rel (0) target = $region37
    $region36: #{tpu_custom_call.1} parent=1 // pred_region
      %980 = vsyncadd [#allocation5], 0
      %s981 = sshll.u32 [#allocation9], 4
      %s982 = int_to_ptr.vmem [resolvable:$true] %s981
      %s983 = sshll.u32 %s3, 4
      %s984 = int_to_ptr.hbm [resolvable:$true] %s983
      %989 = dma.vmem_to_hbm [thread:$0]  %s982, 4096, %s984, [#allocation5], 256, 256, 16
    $region37: #{tpu_custom_call.1} parent=1 // pred_fallthru
      _
    // Predicated region
    $region38: #{tpu_custom_call.1} parent=1 // pred_check
      _
    $region39: #{tpu_custom_call.1} parent=1 // pred_check_branch
      %991 = sbr.rel (0) target = $region41
    $region40: #{tpu_custom_call.1} parent=1 // pred_region
      %993 = dma.done [#allocation5], 4096
    $region41: #{tpu_custom_call.1} parent=1 // pred_fallthru
      _
    %994 = vsyncpa [#allocation4], 1
    %995 = vsyncpa [#allocation7], 1
    %996 = vsyncpa [#allocation5], 1

</llo_original>
